<compile_context>
chip_gen: v7x
topology: tpu7x:2x2x1
jax: 0.10.0
libtpu: 0.0.40
codegen_flags: <defaults>
</compile_context>

<pallas_src>
import functools
import math

import jax
import jax.numpy as jnp
from jax.experimental import pallas as pl
from jax.experimental.pallas import tpu as pltpu


def _round_up(x, m):
    return ((x + m - 1) // m) * m


def _cdiv(a, b):
    return (a + b - 1) // b


def _gelu(x, use_tanh):
    if use_tanh:
        # tanh approximation routes through the EUP (otherwise-idle bundle slot);
        # deviates slightly from PyTorch nn.GELU() default numerics. Opt-in.
        return jax.nn.gelu(x, approximate=True)
    # Exact erf-based GELU, matching PyTorch nn.GELU() default.
    return 0.5 * x * (1.0 + jax.lax.erf(x * (1.0 / math.sqrt(2.0))))


# ---------------------------------------------------------------------------
# Kernels
# ---------------------------------------------------------------------------

def _ffn_single_kernel(x_ref, w1_ref, b1_ref, w2_ref, b2_ref, o_ref, *, use_tanh_gelu):
    """Whole dim_ff fits one slab: no accumulator, write the output directly."""
    h = jnp.dot(x_ref[...], w1_ref[...], preferred_element_type=jnp.float32)
    h = _gelu(h + b1_ref[...], use_tanh_gelu)          # b1 is f32
    # Dropout (eval mode) == identity.
    y = jnp.dot(h.astype(w2_ref.dtype), w2_ref[...], preferred_element_type=jnp.float32)
    o_ref[...] = (y + b2_ref[...]).astype(o_ref.dtype)


def _ffn_multi_kernel(x_ref, w1_ref, b1_ref, w2_ref, b2_ref, o_ref, acc_ref, *,
                      use_tanh_gelu):
    """dim_ff streamed in tf-wide slabs; f32 accumulator resident in VMEM scratch."""
    k = pl.program_id(1)

    @pl.when(k == 0)
    def _init():
        acc_ref[...] = jnp.zeros_like(acc_ref)

    # First matmul: (tm, d_model) @ (d_model, tf) -> f32 (tm, tf)
    h = jnp.dot(x_ref[...], w1_ref[...], preferred_element_type=jnp.float32)
    h = _gelu(h + b1_ref[...], use_tanh_gelu)          # (1, tf) f32 bias slab
    # Dropout (eval mode) == identity.

    # Second matmul (partial product over this dim_ff slab), accumulate in f32.
    acc_ref[...] += jnp.dot(h.astype(w2_ref.dtype), w2_ref[...],
                            preferred_element_type=jnp.float32)

    @pl.when(k == pl.num_programs(1) - 1)
    def _finalize():
        # Dropout (eval mode) == identity.
        o_ref[...] = (acc_ref[...] + b2_ref[...]).astype(o_ref.dtype)


# ---------------------------------------------------------------------------
# Tiling / VMEM budgeting
# ---------------------------------------------------------------------------

_FALLBACK_VMEM_CAPACITY = 64 * 1024 * 1024   # conservative: v7x per-TC VMEM


def _vmem_capacity_bytes():
    try:
        return int(pltpu.get_tpu_info().vmem_capacity_bytes)
    except Exception:
        return _FALLBACK_VMEM_CAPACITY


def _est_vmem(tm, tf, d_model, multi_step, in_bytes, out_bytes):
    w_slabs = 2 * 2 * d_model * tf * in_bytes      # W1 + W2 slabs, double-buffered
    x_tile = 2 * tm * d_model * in_bytes           # x row tile, double-buffered
    o_tile = 2 * tm * d_model * out_bytes          # out row tile, double-buffered
    acc = tm * d_model * 4 if multi_step else 0    # f32 accumulator scratch
    hidden = tm * tf * 4                           # f32 hidden activations (live values)
    biases = 2 * 2 * (tf + d_model) * 4            # f32 b1 slab + b2
    return w_slabs + x_tile + o_tile + acc + hidden + biases


def _tf_candidates(dim_ff):
    """tf values that divide dim_ff exactly (no per-call weight padding), largest first."""
    if dim_ff % 128 == 0:
        base = dim_ff // 128
        return sorted({128 * d for d in range(1, base + 1) if base % d == 0},
                      reverse=True)
    # Full-width slab only: a block dim equal to the full array dim is always legal.
    return [dim_ff]


def _pick_tiles(n_rows, d_model, dim_ff, tm_max, in_bytes, out_bytes, budget):
    # Desired row tile: as large as tm_max allows, but keep >= 2 row tiles so the
    # "parallel" row axis gives both v7x TensorCores work (harmless on v5e/v6e).
    tm_desired = min(tm_max, _round_up(n_rows, 8))
    if n_rows > 8 and _cdiv(n_rows, tm_desired) < 2:
        tm_desired = max(8, _round_up(_cdiv(n_rows, 2), 8))

    best = None   # feasible (tm, tf) maximizing tm, then tf
    for tf in _tf_candidates(dim_ff):
        multi_step = tf < dim_ff
        tm = tm_desired
        while tm > 8 and _est_vmem(tm, tf, d_model, multi_step, in_bytes, out_bytes) > budget:
            tm = max(8, _round_up(tm // 2, 8))
        if _est_vmem(tm, tf, d_model, multi_step, in_bytes, out_bytes) > budget:
            continue
        if tm >= min(256, tm_desired):
            return tm, tf            # biggest tf that still keeps the row tile healthy
        if best is None or (tm, tf) > best:
            best = (tm, tf)
    if best is not None:
        return best
    return 8, _tf_candidates(dim_ff)[-1]   # last resort; est() is conservative


# ---------------------------------------------------------------------------
# Wrapper
# ---------------------------------------------------------------------------

def feedforward(x, w1, b1, w2, b2, *, tm=1024, compute_dtype=jnp.bfloat16,
                use_tanh_gelu=False, vmem_budget_bytes=None, vmem_limit_bytes=None):
    """y = gelu(x @ w1 + b1) @ w2 + b2 over the last dim of x (eval-mode dropout)."""
    orig_shape = x.shape
    out_dtype = x.dtype                    # captured BEFORE any compute_dtype cast
    d_model = orig_shape[-1]
    dim_ff = w1.shape[1]
    assert w1.shape == (d_model, dim_ff)
    assert b1.shape == (dim_ff,)
    assert w2.shape == (dim_ff, d_model)
    assert b2.shape == (d_model,)

    if compute_dtype is not None:
        # bf16 operands + f32 MXU accumulation: full-rate MXU and half the HBM/VMEM
        # traffic for the streamed weights on v5e/v6e/v7x.
        x = x.astype(compute_dtype)
        w1 = w1.astype(compute_dtype)
        w2 = w2.astype(compute_dtype)
    # Biases stay f32 (they are added to f32 values in-kernel; no precision loss).
    b1 = b1.astype(jnp.float32)
    b2 = b2.astype(jnp.float32)

    x2d = x.reshape(-1, d_model)
    n_rows = x2d.shape[0]

    in_bytes = jnp.dtype(x.dtype).itemsize
    out_bytes = jnp.dtype(out_dtype).itemsize

    capacity = _vmem_capacity_bytes()
    if vmem_budget_bytes is None:
        vmem_budget_bytes = int(capacity * 0.70)
    if vmem_limit_bytes is None:
        vmem_limit_bytes = min(int(capacity * 0.92), vmem_budget_bytes + (12 << 20))

    tm, tf = _pick_tiles(n_rows, d_model, dim_ff, tm, in_bytes, out_bytes,
                         vmem_budget_bytes)

    # Only the activations ever need (cheap) row padding; tf divides dim_ff by
    # construction so W1 / W2 / b1 are never copied or padded per call.
    rows_p = _round_up(n_rows, tm)
    if rows_p != n_rows:
        x2d = jnp.pad(x2d, ((0, rows_p - n_rows), (0, 0)))

    b1_2d = b1.reshape(1, dim_ff)
    b2_2d = b2.reshape(1, d_model)

    num_k = dim_ff // tf
    n_row_tiles = rows_p // tm
    w_bytes = jnp.dtype(w1.dtype).itemsize
    weight_streams = 1 if num_k == 1 else n_row_tiles   # weights resident when num_k==1
    cost = pl.CostEstimate(
        flops=2 * 2 * rows_p * d_model * dim_ff,
        transcendentals=rows_p * dim_ff,
        bytes_accessed=(rows_p * d_model * (in_bytes + out_bytes)
                        + weight_streams * 2 * d_model * dim_ff * w_bytes
                        + (dim_ff + d_model) * 4),
    )

    if num_k == 1:
        # Single-slab fast path: no accumulator scratch, no init/finalize branches.
        kernel = functools.partial(_ffn_single_kernel, use_tanh_gelu=use_tanh_gelu)
        grid_spec = pltpu.PrefetchScalarGridSpec(
            num_scalar_prefetch=0,
            grid=(n_row_tiles,),
            in_specs=[
                pl.BlockSpec((tm, d_model), lambda i: (i, 0)),        # x row tile
                pl.BlockSpec((d_model, dim_ff), lambda i: (0, 0)),    # W1 (resident)
                pl.BlockSpec((1, dim_ff), lambda i: (0, 0)),          # b1 (f32)
                pl.BlockSpec((dim_ff, d_model), lambda i: (0, 0)),    # W2 (resident)
                pl.BlockSpec((1, d_model), lambda i: (0, 0)),         # b2 (f32)
            ],
            out_specs=pl.BlockSpec((tm, d_model), lambda i: (i, 0)),
        )
        dims = ("parallel",)
    else:
        kernel = functools.partial(_ffn_multi_kernel, use_tanh_gelu=use_tanh_gelu)
        grid_spec = pltpu.PrefetchScalarGridSpec(
            num_scalar_prefetch=0,
            grid=(n_row_tiles, num_k),
            in_specs=[
                pl.BlockSpec((tm, d_model), lambda i, k: (i, 0)),     # x row tile
                pl.BlockSpec((d_model, tf), lambda i, k: (0, k)),     # W1 slab (streamed)
                pl.BlockSpec((1, tf), lambda i, k: (0, k)),           # b1 slab (f32, tiny)
                pl.BlockSpec((tf, d_model), lambda i, k: (k, 0)),     # W2 slab (streamed)
                pl.BlockSpec((1, d_model), lambda i, k: (0, 0)),      # b2 (f32)
            ],
            out_specs=pl.BlockSpec((tm, d_model), lambda i, k: (i, 0)),
            scratch_shapes=[pltpu.VMEM((tm, d_model), jnp.float32)],
        )
        dims = ("parallel", "arbitrary")

    out = pl.pallas_call(
        kernel,
        out_shape=jax.ShapeDtypeStruct((rows_p, d_model), out_dtype),
        grid_spec=grid_spec,
        compiler_params=pltpu.CompilerParams(
            dimension_semantics=dims,
            vmem_limit_bytes=int(vmem_limit_bytes)),
        cost_estimate=cost,
    )(x2d, w1, b1_2d, w2, b2_2d)

    if rows_p != n_rows:
        out = out[:n_rows]
    return out.reshape(orig_shape)


def init_params(key, d_model, dim_ff, dtype=jnp.float32):
    """Deterministic init mimicking nn.Linear's Kaiming-uniform defaults."""
    k1, k2, k3, k4 = jax.random.split(key, 4)
    bound1 = 1.0 / math.sqrt(d_model)
    bound2 = 1.0 / math.sqrt(dim_ff)
    # Stored as [in, out] (transpose of PyTorch's [out, in]).
    w1 = jax.random.uniform(k1, (d_model, dim_ff), dtype, -bound1, bound1)
    b1 = jax.random.uniform(k2, (dim_ff,), dtype, -bound1, bound1)
    w2 = jax.random.uniform(k3, (dim_ff, d_model), dtype, -bound2, bound2)
    b2 = jax.random.uniform(k4, (d_model,), dtype, -bound2, bound2)
    return w1, b1, w2, b2


if __name__ == "__main__":
    # --- small FeedForward-sized smoke test (single-slab path) ---
    d_model = 32
    dim_feedforward = 64
    batch, seq = 2, 8

    key = jax.random.PRNGKey(0)
    kx, kp = jax.random.split(key)
    x = jax.random.normal(kx, (batch, seq, d_model), jnp.float32)
    w1, b1, w2, b2 = init_params(kp, d_model, dim_feedforward)

    # Reference in plain JAX (eval-mode dropout == identity, exact erf GELU).
    ref = jax.nn.gelu(x @ w1 + b1, approximate=False) @ w2 + b2

    # f32 operand path: must match PyTorch-default numerics tightly.
    out_f32 = feedforward(x, w1, b1, w2, b2, compute_dtype=None)
    out_f32 = jax.block_until_ready(out_f32)
    assert out_f32.shape == x.shape and out_f32.dtype == x.dtype
    assert jnp.allclose(out_f32, ref, atol=1e-5, rtol=1e-5), "f32 mismatch vs reference"

    # Default fast path: bf16 operands + f32 accumulation; output dtype stays f32.
    out_bf16 = feedforward(x, w1, b1, w2, b2)
    out_bf16 = jax.block_until_ready(out_bf16)
    assert out_bf16.shape == x.shape and out_bf16.dtype == x.dtype
    assert float(jnp.max(jnp.abs(out_bf16 - ref))) < 0.1, "bf16 mismatch vs reference"

    # --- exercise the multi-slab (streamed dim_ff + f32 accumulator) path ---
    d2, ff2 = 128, 512
    x2 = jax.random.normal(jax.random.PRNGKey(1), (2, 16, d2), jnp.float32)
    w1b, b1b, w2b, b2b = init_params(jax.random.PRNGKey(2), d2, ff2)
    ref2 = jax.nn.gelu(x2 @ w1b + b1b, approximate=False) @ w2b + b2b
    # Tiny budget forces tf=128 < dim_ff -> multi-step accumulator kernel.
    out2 = feedforward(x2, w1b, b1b, w2b, b2b, compute_dtype=None,
                       vmem_budget_bytes=1 * 1024 * 1024)
    out2 = jax.block_until_ready(out2)
    assert out2.shape == x2.shape
    assert jnp.allclose(out2, ref2, atol=1e-5, rtol=1e-5), "multi-slab mismatch"

    print("KERNEL_OK")
</pallas_src>

<mosaic_0001>
module attributes {stable_mosaic.version = 11 : i64} {
  func.func @_ffn_single_kernel(%arg0: i32, %arg1: memref<8x32xf32, #tpu.memory_space<vmem>>, %arg2: memref<32x64xf32, #tpu.memory_space<vmem>>, %arg3: memref<1x64xf32, #tpu.memory_space<vmem>>, %arg4: memref<64x32xf32, #tpu.memory_space<vmem>>, %arg5: memref<1x32xf32, #tpu.memory_space<vmem>>, %arg6: memref<8x32xf32, #tpu.memory_space<vmem>>) attributes {dimension_semantics = [#tpu.dimension_semantics<parallel>], iteration_bounds = array<i64: 2>, scalar_prefetch = 0 : i64, scratch_operands = 0 : i64, tpu.core_type = #tpu.core_type<tc>, window_params = [{transform_indices = @transform_0, window_bounds = array<i64: 8, 32>}, {pipeline_mode = #tpu.pipeline_mode<synchronous>, transform_indices = @transform_1, window_bounds = array<i64: 32, 64>}, {pipeline_mode = #tpu.pipeline_mode<synchronous>, transform_indices = @transform_2, window_bounds = array<i64: 1, 64>}, {pipeline_mode = #tpu.pipeline_mode<synchronous>, transform_indices = @transform_3, window_bounds = array<i64: 64, 32>}, {pipeline_mode = #tpu.pipeline_mode<synchronous>, transform_indices = @transform_4, window_bounds = array<i64: 1, 32>}, {transform_indices = @transform_5, window_bounds = array<i64: 8, 32>}]} {
    %c0 = arith.constant 0 : index
    %c0_0 = arith.constant 0 : index
    %0 = vector.load %arg1[%c0, %c0_0] : memref<8x32xf32, #tpu.memory_space<vmem>>, vector<8x32xf32>
    %c0_1 = arith.constant 0 : index
    %c0_2 = arith.constant 0 : index
    %1 = vector.load %arg2[%c0_1, %c0_2] : memref<32x64xf32, #tpu.memory_space<vmem>>, vector<32x64xf32>
    %cst = arith.constant dense<0.000000e+00> : vector<8x64xf32>
    %2 = tpu.matmul %0, %1, %cst {dimension_numbers = #tpu.dot_dimension_numbers<[1], [0], [0], [1], [0, 0, 1, 1], [], []>} : vector<8x32xf32>, vector<32x64xf32>, vector<8x64xf32> -> vector<8x64xf32>
    %c0_3 = arith.constant 0 : index
    %c0_4 = arith.constant 0 : index
    %3 = vector.load %arg3[%c0_3, %c0_4] : memref<1x64xf32, #tpu.memory_space<vmem>>, vector<1x64xf32>
    %4 = vector.broadcast %3 : vector<1x64xf32> to vector<8x64xf32>
    %5 = arith.addf %2, %4 : vector<8x64xf32>
    %cst_5 = arith.constant 5.000000e-01 : f32
    %6 = vector.broadcast %cst_5 : f32 to vector<8x64xf32>
    %7 = arith.mulf %6, %5 : vector<8x64xf32>
    %cst_6 = arith.constant 0.707106769 : f32
    %8 = vector.broadcast %cst_6 : f32 to vector<8x64xf32>
    %9 = arith.mulf %5, %8 : vector<8x64xf32>
    %10 = math.erf %9 : vector<8x64xf32>
    %cst_7 = arith.constant 1.000000e+00 : f32
    %11 = vector.broadcast %cst_7 : f32 to vector<8x64xf32>
    %12 = arith.addf %11, %10 : vector<8x64xf32>
    %13 = arith.mulf %7, %12 : vector<8x64xf32>
    %c0_8 = arith.constant 0 : index
    %c0_9 = arith.constant 0 : index
    %14 = vector.load %arg4[%c0_8, %c0_9] : memref<64x32xf32, #tpu.memory_space<vmem>>, vector<64x32xf32>
    %cst_10 = arith.constant dense<0.000000e+00> : vector<8x32xf32>
    %15 = tpu.matmul %13, %14, %cst_10 {dimension_numbers = #tpu.dot_dimension_numbers<[1], [0], [0], [1], [0, 0, 1, 1], [], []>} : vector<8x64xf32>, vector<64x32xf32>, vector<8x32xf32> -> vector<8x32xf32>
    %c0_11 = arith.constant 0 : index
    %c0_12 = arith.constant 0 : index
    %16 = vector.load %arg5[%c0_11, %c0_12] : memref<1x32xf32, #tpu.memory_space<vmem>>, vector<1x32xf32>
    %17 = vector.broadcast %16 : vector<1x32xf32> to vector<8x32xf32>
    %18 = arith.addf %15, %17 : vector<8x32xf32>
    %c0_13 = arith.constant 0 : index
    %c0_14 = arith.constant 0 : index
    %19 = vector.load %arg6[%c0_13, %c0_14] : memref<8x32xf32, #tpu.memory_space<vmem>>, vector<8x32xf32>
    tpu.vector_store %arg6[%c0_13, %c0_14], %18 {strides = array<i32>} : memref<8x32xf32, #tpu.memory_space<vmem>>, vector<8x32xf32>,
    return
  }
  func.func @transform_0(%arg0: i32) -> (i32, i32) {
    %c0_i32 = arith.constant 0 : i32
    %c0_i32_0 = arith.constant 0 : i32
    return %arg0, %c0_i32 : i32, i32
  }
  func.func @transform_1(%arg0: i32) -> (i32, i32) {
    %c0_i32 = arith.constant 0 : i32
    %c0_i32_0 = arith.constant 0 : i32
    %c0_i32_1 = arith.constant 0 : i32
    return %c0_i32, %c0_i32_0 : i32, i32
  }
  func.func @transform_2(%arg0: i32) -> (i32, i32) {
    %c0_i32 = arith.constant 0 : i32
    %c0_i32_0 = arith.constant 0 : i32
    %c0_i32_1 = arith.constant 0 : i32
    return %c0_i32, %c0_i32_0 : i32, i32
  }
  func.func @transform_3(%arg0: i32) -> (i32, i32) {
    %c0_i32 = arith.constant 0 : i32
    %c0_i32_0 = arith.constant 0 : i32
    %c0_i32_1 = arith.constant 0 : i32
    return %c0_i32, %c0_i32_0 : i32, i32
  }
  func.func @transform_4(%arg0: i32) -> (i32, i32) {
    %c0_i32 = arith.constant 0 : i32
    %c0_i32_0 = arith.constant 0 : i32
    %c0_i32_1 = arith.constant 0 : i32
    return %c0_i32, %c0_i32_0 : i32, i32
  }
  func.func @transform_5(%arg0: i32) -> (i32, i32) {
    %c0_i32 = arith.constant 0 : i32
    %c0_i32_0 = arith.constant 0 : i32
    return %arg0, %c0_i32 : i32, i32
  }
}

</mosaic_0001>

<llo_original>
// kernel: tpu_custom_call.1
$region0: #{tpu_custom_call.1}
  #allocation0 [shape = 'u32[]', space=smem, size = 0x4, offset = 0x4, fixed_abs, tag = 'smem constant byte address 0x4 - core index']
  #allocation1 [shape = 'u32[144,128]{1,0:T(1,128)}', space=vmem, size = 0x12000, scoped, tag = 'internal scratch']
  %s0 = inlined_call_operand.vmem [shape: f32[16,32], index: 0, kind: input, shape index: {}]
  %s1 = inlined_call_operand.vmem [shape: f32[32,64], index: 1, kind: input, shape index: {}]
  %s2 = inlined_call_operand.vmem [shape: f32[1,64], index: 2, kind: input, shape index: {}]
  %s3 = inlined_call_operand.vmem [shape: f32[64,32], index: 3, kind: input, shape index: {}]
  %s4 = inlined_call_operand.vmem [shape: f32[1,32], index: 4, kind: input, shape index: {}]
  %s5 = inlined_call_operand.hbm [shape: f32[16,32], index: 5, kind: output, shape index: {}]
  %s6 = sld [smem:[#allocation0]]
  $region53: #{tpu_custom_call.1} parent=0
    _
  %s8 = ssub.s32 1, %s6
  %s9 = scalar_select 0, %s8, %s6
  $region1: #{tpu_custom_call.1} parent=0
    #allocation2 [shape = 'u8[8192]{0}', space=vmem, size = 0x2000, scoped, tag = 'output window, operand 0']
    #allocation3 [shape = 's32[2]{0}', space=sflag, size = 0x8, scoped, tag = 'scoped memory for tpu_custom_call.1']
    %10 = vsyncpa [#allocation3], 0
    %s11 = scalar_lea.sflag [#allocation3], 1
    %12 = vsyncpa %s11, 0
    loop: start=0, step=1, limit=4
    $region2: #{tpu_custom_call.1} parent=1 // loop_pre_header
      _
    $region3: #{tpu_custom_call.1} parent=1 // loop_header
      %s14 = sphi 0, %s18
      %p15 = scmp.ge.s32.totalorder %s14, 4
      %s24 = sphi 0, %s26
      %s27 = sphi 0, %s24
      %s28 = sphi 0, %s27
      %s44 = sphi 0, %s28
      %s48 = sphi 0, %s48
      %s50 = sphi 0, %s48
      %s51 = sphi 0, %s50
      %s65 = sphi 0, %s51
      %s69 = sphi 0, %s69
      %s71 = sphi 0, %s69
      %s72 = sphi 0, %s71
      %s86 = sphi 0, %s72
      %s90 = sphi 0, %s90
      %s92 = sphi 0, %s90
      %s93 = sphi 0, %s92
      %s107 = sphi 0, %s93
      %s111 = sphi 0, %s111
      %s113 = sphi 0, %s111
      %s114 = sphi 0, %s113
      %s128 = sphi 0, %s114
      %s134 = sphi 0, %s136
      %s137 = sphi 0, %s134
      %s138 = sphi 0, %s137
      %s154 = sphi 0, %s138
    $region4: #{tpu_custom_call.1} parent=1 // loop_header_branch
      %17 = sbr.rel (%p15) target = $region8
    $region5: #{tpu_custom_call.1} parent=1 // loop_body
      %s19 = ssub.s32 %s14, 1
      %s20 = ssub.s32 %s14, 2
      %s21 = sadd.s32 %s14, 1
      %s22 = ssub.s32 %s14, %s21
      %p23 = scmp.eq.s32.totalorder %s22, 0
      %s25 = sadd.s32 %s24, 1
      %s26 = scalar_select %p23, %s24, %s25
      %p29 = pneg %p23
      %p30 = scmp.eq.s32.totalorder %s14, 1
      %p31 = por %p29, %p30
      %p32 = scmp.ne.s32.totalorder %s24, %s27
      %p33 = scmp.eq.s32.totalorder %s14, 0
      %p34 = por %p32, %p33
      %p35 = scmp.ne.s32.totalorder %s24, %s27
      %p36 = scmp.eq.s32.totalorder %s19, 1
      %p37 = por %p35, %p36
      %p38 = scmp.ne.s32.totalorder %s27, %s28
      %p39 = scmp.eq.s32.totalorder %s19, 0
      %p40 = por %p38, %p39
      %p41 = scmp.ne.s32.totalorder %s27, %s28
      %p42 = scmp.eq.s32.totalorder %s20, 1
      %p43 = por %p41, %p42
      %p45 = scmp.ne.s32.totalorder %s28, %s44
      %p46 = scmp.eq.s32.totalorder %s20, 0
      %p47 = por %p45, %p46
      %s49 = sadd.s32 %s48, 1
      %p52 = scmp.eq.s32.totalorder %s14, 1
      %p53 = scmp.ne.s32.totalorder %s48, %s50
      %p54 = scmp.eq.s32.totalorder %s14, 0
      %p55 = por %p53, %p54
      %p56 = scmp.ne.s32.totalorder %s48, %s50
      %p57 = scmp.eq.s32.totalorder %s19, 1
      %p58 = por %p56, %p57
      %p59 = scmp.ne.s32.totalorder %s50, %s51
      %p60 = scmp.eq.s32.totalorder %s19, 0
      %p61 = por %p59, %p60
      %p62 = scmp.ne.s32.totalorder %s50, %s51
      %p63 = scmp.eq.s32.totalorder %s20, 1
      %p64 = por %p62, %p63
      %p66 = scmp.ne.s32.totalorder %s51, %s65
      %p67 = scmp.eq.s32.totalorder %s20, 0
      %p68 = por %p66, %p67
      %s70 = sadd.s32 %s69, 1
      %p73 = scmp.eq.s32.totalorder %s14, 1
      %p74 = scmp.ne.s32.totalorder %s69, %s71
      %p75 = scmp.eq.s32.totalorder %s14, 0
      %p76 = por %p74, %p75
      %p77 = scmp.ne.s32.totalorder %s69, %s71
      %p78 = scmp.eq.s32.totalorder %s19, 1
      %p79 = por %p77, %p78
      %p80 = scmp.ne.s32.totalorder %s71, %s72
      %p81 = scmp.eq.s32.totalorder %s19, 0
      %p82 = por %p80, %p81
      %p83 = scmp.ne.s32.totalorder %s71, %s72
      %p84 = scmp.eq.s32.totalorder %s20, 1
      %p85 = por %p83, %p84
      %p87 = scmp.ne.s32.totalorder %s72, %s86
      %p88 = scmp.eq.s32.totalorder %s20, 0
      %p89 = por %p87, %p88
      %s91 = sadd.s32 %s90, 1
      %p94 = scmp.eq.s32.totalorder %s14, 1
      %p95 = scmp.ne.s32.totalorder %s90, %s92
      %p96 = scmp.eq.s32.totalorder %s14, 0
      %p97 = por %p95, %p96
      %p98 = scmp.ne.s32.totalorder %s90, %s92
      %p99 = scmp.eq.s32.totalorder %s19, 1
      %p100 = por %p98, %p99
      %p101 = scmp.ne.s32.totalorder %s92, %s93
      %p102 = scmp.eq.s32.totalorder %s19, 0
      %p103 = por %p101, %p102
      %p104 = scmp.ne.s32.totalorder %s92, %s93
      %p105 = scmp.eq.s32.totalorder %s20, 1
      %p106 = por %p104, %p105
      %p108 = scmp.ne.s32.totalorder %s93, %s107
      %p109 = scmp.eq.s32.totalorder %s20, 0
      %p110 = por %p108, %p109
      %s112 = sadd.s32 %s111, 1
      %p115 = scmp.eq.s32.totalorder %s14, 1
      %p116 = scmp.ne.s32.totalorder %s111, %s113
      %p117 = scmp.eq.s32.totalorder %s14, 0
      %p118 = por %p116, %p117
      %p119 = scmp.ne.s32.totalorder %s111, %s113
      %p120 = scmp.eq.s32.totalorder %s19, 1
      %p121 = por %p119, %p120
      %p122 = scmp.ne.s32.totalorder %s113, %s114
      %p123 = scmp.eq.s32.totalorder %s19, 0
      %p124 = por %p122, %p123
      %p125 = scmp.ne.s32.totalorder %s113, %s114
      %p126 = scmp.eq.s32.totalorder %s20, 1
      %p127 = por %p125, %p126
      %p129 = scmp.ne.s32.totalorder %s114, %s128
      %p130 = scmp.eq.s32.totalorder %s20, 0
      %p131 = por %p129, %p130
      %s132 = ssub.s32 %s14, %s21
      %p133 = scmp.eq.s32.totalorder %s132, 0
      %s135 = sadd.s32 %s134, 1
      %s136 = scalar_select %p133, %s134, %s135
      %p139 = pneg %p133
      %p140 = scmp.eq.s32.totalorder %s14, 1
      %p141 = por %p139, %p140
      %p142 = scmp.ne.s32.totalorder %s134, %s137
      %p143 = scmp.eq.s32.totalorder %s14, 0
      %p144 = por %p142, %p143
      %p145 = scmp.ne.s32.totalorder %s134, %s137
      %p146 = scmp.eq.s32.totalorder %s19, 1
      %p147 = por %p145, %p146
      %p148 = scmp.ne.s32.totalorder %s137, %s138
      %p149 = scmp.eq.s32.totalorder %s19, 0
      %p150 = por %p148, %p149
      %p151 = scmp.ne.s32.totalorder %s137, %s138
      %p152 = scmp.eq.s32.totalorder %s20, 1
      %p153 = por %p151, %p152
      %p155 = scmp.ne.s32.totalorder %s138, %s154
      %p156 = scmp.eq.s32.totalorder %s20, 0
      %p157 = por %p155, %p156
      %p158 = scmp.le.s32.totalorder 1, %s14
      %p159 = scmp.lt.s32.totalorder %s14, 3
      %p160 = pnand %p158, %p159
      %p161 = pneg %p160
      // Predicated region
      $region9: #{tpu_custom_call.1} parent=5 // pred_check
        _
      $region10: #{tpu_custom_call.1} parent=5 // pred_check_branch
        %163 = sbr.rel (%p160) target = $region12
      $region11: #{tpu_custom_call.1} parent=5 // pred_region
        %s164 = ssub.s32 %s14, 1
        // Predicated region
        $region13: #{tpu_custom_call.1} parent=11 // pred_check
          %p165 = pneg %p61
        $region14: #{tpu_custom_call.1} parent=11 // pred_check_branch
          %167 = sbr.rel (%p165) target = $region16
        $region15: #{tpu_custom_call.1} parent=11 // pred_region
          _
        $region16: #{tpu_custom_call.1} parent=11 // pred_fallthru
          _
        // Predicated region
        $region17: #{tpu_custom_call.1} parent=11 // pred_check
          %p168 = pneg %p82
        $region18: #{tpu_custom_call.1} parent=11 // pred_check_branch
          %170 = sbr.rel (%p168) target = $region20
        $region19: #{tpu_custom_call.1} parent=11 // pred_region
          _
        $region20: #{tpu_custom_call.1} parent=11 // pred_fallthru
          _
        // Predicated region
        $region21: #{tpu_custom_call.1} parent=11 // pred_check
          %p171 = pneg %p103
        $region22: #{tpu_custom_call.1} parent=11 // pred_check_branch
          %173 = sbr.rel (%p171) target = $region24
        $region23: #{tpu_custom_call.1} parent=11 // pred_region
          _
        $region24: #{tpu_custom_call.1} parent=11 // pred_fallthru
          _
        // Predicated region
        $region25: #{tpu_custom_call.1} parent=11 // pred_check
          %p174 = pneg %p124
        $region26: #{tpu_custom_call.1} parent=11 // pred_check_branch
          %176 = sbr.rel (%p174) target = $region28
        $region27: #{tpu_custom_call.1} parent=11 // pred_region
          _
        $region28: #{tpu_custom_call.1} parent=11 // pred_fallthru
          _
      $region12: #{tpu_custom_call.1} parent=5 // pred_fallthru
        _
      %p177 = scmp.lt.s32.totalorder %s14, 2
      // Predicated region
      $region29: #{tpu_custom_call.1} parent=5 // pred_check
        %p178 = pneg %p177
      $region30: #{tpu_custom_call.1} parent=5 // pred_check_branch
        %180 = sbr.rel (%p178) target = $region32
      $region31: #{tpu_custom_call.1} parent=5 // pred_region
        // Predicated region
        $region33: #{tpu_custom_call.1} parent=31 // pred_check
          %p181 = pneg %p34
        $region34: #{tpu_custom_call.1} parent=31 // pred_check_branch
          %183 = sbr.rel (%p181) target = $region36
        $region35: #{tpu_custom_call.1} parent=31 // pred_region
          %p184 = scmp.lt.s32.totalorder %s14, 1
          %s185 = scalar_select %p184, %s14, 1
          %s186 = smul.addr %s185, 8
          %s187 = scalar_lea.vmem %s0, %s186
        $region36: #{tpu_custom_call.1} parent=31 // pred_fallthru
          _
      $region32: #{tpu_custom_call.1} parent=5 // pred_fallthru
        _
      %p188 = scmp.le.s32.totalorder 1, %s14
      %p189 = scmp.lt.s32.totalorder %s14, 3
      %p190 = pnand %p188, %p189
      %p191 = pneg %p190
      // Predicated region
      $region37: #{tpu_custom_call.1} parent=5 // pred_check
        _
      $region38: #{tpu_custom_call.1} parent=5 // pred_check_branch
        %193 = sbr.rel (%p190) target = $region40
      $region39: #{tpu_custom_call.1} parent=5 // pred_region
        %s194 = ssub.s32 %s14, 1
        %p195 = scmp.lt.s32.totalorder %s19, 1
        %s196 = scalar_select %p195, %s19, 1
        %s197 = smul.addr %s196, 8
        %s198 = scalar_lea.vmem %s0, %s197
        %p199 = pneg %p40
        %p200 = pneg %p37
        %p201 = pneg %p61
        %p202 = pneg %p58
        %p203 = pneg %p82
        %p204 = pneg %p79
        %p205 = pneg %p103
        %p206 = pneg %p100
        %p207 = pneg %p124
        %p208 = pneg %p121
        %p209 = pneg %p150
        %p210 = pneg %p147
        %s211 = sand.u32 %s137, 1
        %s212 = scalar_lea.sflag [#allocation3], %s211
        %s213 = sand.u32 %s137, 1
        %s214 = smul.addr %s213, 8
        %s215 = scalar_lea.vmem [#allocation2], %s214
        %p216 = scmp.lt.s32.totalorder %s19, 1
        %s217 = scalar_select %p216, %s19, 1
        %s218 = smul.addr %s217, 8
        %s219 = scalar_lea.vmem %s0, %s218
        %v220 = vld [vmem:[%s219] sm:$0xff]
        %v221 = vld [vmem:[%s1] sm:$0xff]
        %v222 = vld [vmem:[%s1 + $0x8] sm:$0xff]
        %v223 = vld [vmem:[%s1 + $0x10] sm:$0xff]
        %v224 = vld [vmem:[%s1 + $0x18] sm:$0xff]
        %v225 = vld [vmem:[%s2] sm:$0x1]
        %v227 = vlaneseq
        %v228 = vshrl.u32 %v227, 7
        %v229 = vsub.s32 0, %v228
        %v230 = vrot.slane %v225, %v229
        %vm232 = vcmask 261120
        %v234 = vsel %vm232, %v220, 0
        %236 = vmatprep.subr.mxu0 0.0
        %237 = vmatpush1.msra.mxu0 %v221
        %238 = vmatprep.subr.mxu0 0.0
        %239 = vmatpush1.msra.mxu0 %v222
        %240 = vmatprep.subr.mxu0 0.0
        %241 = vmatpush1.msra.mxu0 %v223
        %242 = vmatprep.subr.mxu0 0.0
        %243 = vmatpush1.msra.mxu0 %v224
        %244 = vmatprep.subr.mxu0 0.0
        %245 = vmatpush1.msra.mxu0 0.0
        %246 = vmatprep.subr.mxu0 0.0
        %247 = vmatpush1.msra.mxu0 0.0
        %248 = vmatprep.subr.mxu0 0.0
        %249 = vmatpush1.msra.mxu0 0.0
        %250 = vmatprep.subr.mxu0 0.0
        %251 = vmatpush1.msra.mxu0 0.0
        %252 = vmatprep.subr.mxu0 0.0
        %253 = vmatpush1.msra.mxu0 0.0
        %254 = vmatprep.subr.mxu0 0.0
        %255 = vmatpush1.msra.mxu0 0.0
        %256 = vmatprep.subr.mxu0 0.0
        %257 = vmatpush1.msra.mxu0 0.0
        %258 = vmatprep.subr.mxu0 0.0
        %259 = vmatpush1.msra.mxu0 0.0
        %260 = vmatprep.subr.mxu0 0.0
        %261 = vmatpush1.msra.mxu0 0.0
        %262 = vmatprep.subr.mxu0 0.0
        %263 = vmatpush1.msra.mxu0 0.0
        %264 = vmatprep.subr.mxu0 0.0
        %265 = vmatpush1.msra.mxu0 0.0
        %266 = vmatprep.subr.mxu0 0.0
        %267 = vmatpush1.msra.mxu0 0.0
        %268 = vmatprep.subr.mxu0 0.0
        %269 = vmatpush1.msra.mxu0 0.0
        %270 = vmatprep.subr.mxu0 0.0
        %271 = vmatpush1.msra.mxu0 0.0
        %272 = vmatprep.subr.mxu0 0.0
        %273 = vmatpush1.msra.mxu0 0.0
        %274 = vmatprep.subr.mxu0 0.0
        %275 = vmatpush1.msra.mxu0 0.0
        %276 = vmatprep.subr.mxu0 0.0
        %277 = vmatpush1.msra.mxu0 0.0
        %278 = vmatprep.subr.mxu0 0.0
        %279 = vmatpush1.msra.mxu0 0.0
        %280 = vmatprep.subr.mxu0 0.0
        %281 = vmatpush1.msra.mxu0 0.0
        %282 = vmatprep.subr.mxu0 0.0
        %283 = vmatpush1.msra.mxu0 0.0
        %284 = vmatprep.subr.mxu0 0.0
        %285 = vmatpush1.msra.mxu0 0.0
        %286 = vmatprep.subr.mxu0 0.0
        %287 = vmatpush1.msra.mxu0 0.0
        %288 = vmatprep.subr.mxu0 0.0
        %289 = vmatpush1.msra.mxu0 0.0
        %290 = vmatprep.subr.mxu0 0.0
        %291 = vmatpush1.msra.mxu0 0.0
        %292 = vmatprep.subr.mxu0 0.0
        %293 = vmatpush1.msra.mxu0 0.0
        %294 = vmatprep.subr.mxu0 0.0
        %295 = vmatpush1.msra.mxu0 0.0
        %296 = vmatprep.subr.mxu0 0.0
        %297 = vmatpush1.msra.mxu0 0.0
        %298 = vmatprep.subr.mxu0 0.0
        %299 = vmatpush1.msra.mxu0 0.0
        %300 = vmatprep.mubr.f32.mxu0 0.0
        %301 = vmatmul.mubr.f32.gmra.mrb[0].mxu0 %v234
        %v302 = vpop.f32.mrb[0].mxu0
        %v303 = vadd.f32 %v230, %v302
        %v304 = vpop.f32.mrb[0].mxu0
        %305 = vdwg.mxu0
        %v306 = vmul.f32 %v303, 0.5
        %v307 = vmul.f32 %v303, 0.70710677
        %v308 = verf.f32.pop %v307
        %v309 = vadd.f32 %v308, 1.0
        %v310 = vmul.f32 %v306, %v309
        %v311 = vld [vmem:[%s3] sm:$0xff]
        %v312 = vld [vmem:[%s3 + $0x8] sm:$0xff]
        %v313 = vld [vmem:[%s3 + $0x10] sm:$0xff]
        %v314 = vld [vmem:[%s3 + $0x18] sm:$0xff]
        %v315 = vld [vmem:[%s3 + $0x20] sm:$0xff]
        %v316 = vld [vmem:[%s3 + $0x28] sm:$0xff]
        %v317 = vld [vmem:[%s3 + $0x30] sm:$0xff]
        %v318 = vld [vmem:[%s3 + $0x38] sm:$0xff]
        %v319 = vld [vmem:[%s4] sm:$0x1]
        %v321 = vlaneseq
        %v322 = vshrl.u32 %v321, 7
        %v323 = vsub.s32 0, %v322
        %v324 = vrot.slane %v319, %v323
        %vm326 = vcmask 523264
        %v328 = vsel %vm326, %v310, 0
        %330 = vmatprep.subr.mxu0 0.0
        %331 = vmatpush1.msra.mxu0 %v311
        %332 = vmatprep.subr.mxu0 0.0
        %333 = vmatpush1.msra.mxu0 %v312
        %334 = vmatprep.subr.mxu0 0.0
        %335 = vmatpush1.msra.mxu0 %v313
        %336 = vmatprep.subr.mxu0 0.0
        %337 = vmatpush1.msra.mxu0 %v314
        %338 = vmatprep.subr.mxu0 0.0
        %339 = vmatpush1.msra.mxu0 %v315
        %340 = vmatprep.subr.mxu0 0.0
        %341 = vmatpush1.msra.mxu0 %v316
        %342 = vmatprep.subr.mxu0 0.0
        %343 = vmatpush1.msra.mxu0 %v317
        %344 = vmatprep.subr.mxu0 0.0
        %345 = vmatpush1.msra.mxu0 %v318
        %346 = vmatprep.subr.mxu0 0.0
        %347 = vmatpush1.msra.mxu0 0.0
        %348 = vmatprep.subr.mxu0 0.0
        %349 = vmatpush1.msra.mxu0 0.0
        %350 = vmatprep.subr.mxu0 0.0
        %351 = vmatpush1.msra.mxu0 0.0
        %352 = vmatprep.subr.mxu0 0.0
        %353 = vmatpush1.msra.mxu0 0.0
        %354 = vmatprep.subr.mxu0 0.0
        %355 = vmatpush1.msra.mxu0 0.0
        %356 = vmatprep.subr.mxu0 0.0
        %357 = vmatpush1.msra.mxu0 0.0
        %358 = vmatprep.subr.mxu0 0.0
        %359 = vmatpush1.msra.mxu0 0.0
        %360 = vmatprep.subr.mxu0 0.0
        %361 = vmatpush1.msra.mxu0 0.0
        %362 = vmatprep.subr.mxu0 0.0
        %363 = vmatpush1.msra.mxu0 0.0
        %364 = vmatprep.subr.mxu0 0.0
        %365 = vmatpush1.msra.mxu0 0.0
        %366 = vmatprep.subr.mxu0 0.0
        %367 = vmatpush1.msra.mxu0 0.0
        %368 = vmatprep.subr.mxu0 0.0
        %369 = vmatpush1.msra.mxu0 0.0
        %370 = vmatprep.subr.mxu0 0.0
        %371 = vmatpush1.msra.mxu0 0.0
        %372 = vmatprep.subr.mxu0 0.0
        %373 = vmatpush1.msra.mxu0 0.0
        %374 = vmatprep.subr.mxu0 0.0
        %375 = vmatpush1.msra.mxu0 0.0
        %376 = vmatprep.subr.mxu0 0.0
        %377 = vmatpush1.msra.mxu0 0.0
        %378 = vmatprep.subr.mxu0 0.0
        %379 = vmatpush1.msra.mxu0 0.0
        %380 = vmatprep.subr.mxu0 0.0
        %381 = vmatpush1.msra.mxu0 0.0
        %382 = vmatprep.subr.mxu0 0.0
        %383 = vmatpush1.msra.mxu0 0.0
        %384 = vmatprep.subr.mxu0 0.0
        %385 = vmatpush1.msra.mxu0 0.0
        %386 = vmatprep.subr.mxu0 0.0
        %387 = vmatpush1.msra.mxu0 0.0
        %388 = vmatprep.subr.mxu0 0.0
        %389 = vmatpush1.msra.mxu0 0.0
        %390 = vmatprep.subr.mxu0 0.0
        %391 = vmatpush1.msra.mxu0 0.0
        %392 = vmatprep.subr.mxu0 0.0
        %393 = vmatpush1.msra.mxu0 0.0
        %394 = vmatprep.mubr.f32.mxu0 0.0
        %395 = vmatmul.mubr.f32.gmra.mrb[0].mxu0 %v328
        %v396 = vpop.f32.mrb[0].mxu0
        %v397 = vadd.f32 %v324, %v396
        %v398 = vpop.f32.mrb[0].mxu0
        %399 = vdwg.mxu0
        %400 = vst.msk [vmem:[%s215] sm:$0xff] %vm232, %v397
        %s401 = sand.u32 %s137, 1
        %s402 = scalar_lea.sflag [#allocation3], %s401
        %s403 = sand.u32 %s137, 1
        %s404 = smul.addr %s403, 8
        %s405 = scalar_lea.vmem [#allocation2], %s404
        // Predicated region
        $region41: #{tpu_custom_call.1} parent=39 // pred_check
          %p406 = pneg %p147
        $region42: #{tpu_custom_call.1} parent=39 // pred_check_branch
          %408 = sbr.rel (%p406) target = $region44
        $region43: #{tpu_custom_call.1} parent=39 // pred_region
          %s410 = ssub.s32 128, 128
          %411 = vsyncadd %s402, %s410
          %s412 = smul.addr %s19, 128
          %s413 = scalar_lea.hbm %s5, %s412
          %s415 = sshll.u32 %s405, 4
          %s416 = int_to_ptr.vmem [resolvable:$true] %s415
          %418 = dma.vmem_to_hbm [thread:$0]  %s416, 128, %s413, %s402
        $region44: #{tpu_custom_call.1} parent=39 // pred_fallthru
          _
      $region40: #{tpu_custom_call.1} parent=5 // pred_fallthru
        _
      %p419 = scmp.le.s32.totalorder 2, %s14
      // Predicated region
      $region45: #{tpu_custom_call.1} parent=5 // pred_check
        %p420 = pneg %p419
      $region46: #{tpu_custom_call.1} parent=5 // pred_check_branch
        %422 = sbr.rel (%p420) target = $region48
      $region47: #{tpu_custom_call.1} parent=5 // pred_region
        %s423 = ssub.s32 %s14, 2
        // Predicated region
        $region49: #{tpu_custom_call.1} parent=47 // pred_check
          %p424 = pneg %p153
        $region50: #{tpu_custom_call.1} parent=47 // pred_check_branch
          %426 = sbr.rel (%p424) target = $region52
        $region51: #{tpu_custom_call.1} parent=47 // pred_region
          %s427 = sand.u32 %s138, 1
          %s428 = scalar_lea.sflag [#allocation3], %s427
          %s429 = sand.u32 %s138, 1
          %s430 = smul.addr %s429, 8
          %s431 = scalar_lea.vmem [#allocation2], %s430
          %432 = dma.done %s428, 128
        $region52: #{tpu_custom_call.1} parent=47 // pred_fallthru
          _
      $region48: #{tpu_custom_call.1} parent=5 // pred_fallthru
        _
    $region6: #{tpu_custom_call.1} parent=1 // loop_footer
      %s18 = sadd.s32 1, %s14
    $region7: #{tpu_custom_call.1} parent=1 // loop_footer_branch
      %13 = sbr.rel target = $region3
    $region8: #{tpu_custom_call.1} parent=1 // loop_exit
      _
    %433 = vsyncpa [#allocation3], 1
    %s434 = scalar_lea.sflag [#allocation3], 1
    %435 = vsyncpa %s434, 1

</llo_original>
